<compile_context>
chip_gen: v6e
topology: v6e:2x2x1
jax: 0.10.0
libtpu: 0.0.40
codegen_flags: <defaults>
</compile_context>

<pallas_src>
import functools

import jax
import jax.numpy as jnp
from jax.experimental import pallas as pl
from jax.experimental.pallas import tpu as pltpu


# ---------------------------------------------------------------------------
# Fused kernel: LinearPooler for queries + keys and grouped rerank scores.
#   q_reps = ReLU(q_cls @ W1 + b1) @ W2 + b2          (TILE_Q, D)
#   p_reps = ReLU(p_cls @ W1 + b1) @ W2 + b2          (TILE_Q*K, D)
#   scores[b*K + k] = q_reps[b] . p_reps[b*K + k]     (TILE_Q*K, 1)
# ---------------------------------------------------------------------------
def _fused_rerank_kernel(qc_ref, pc_ref, w1_ref, b1_ref, w2_ref, b2_ref,
                         qrep_ref, prep_ref, score_ref, *, k_per_query):
    # Weights are bf16 (MXU operands), biases f32 (added to f32 accumulators).
    w1 = w1_ref[...]
    w2 = w2_ref[...]
    b1 = b1_ref[...]
    b2 = b2_ref[...]

    def pool(x):
        xb = x.astype(jnp.bfloat16)
        h = jnp.dot(xb, w1, preferred_element_type=jnp.float32) + b1
        h = jnp.maximum(h, 0.0)                       # ReLU in f32
        y = jnp.dot(h.astype(jnp.bfloat16), w2,
                    preferred_element_type=jnp.float32) + b2
        return y                                      # f32

    q = pool(qc_ref[...])                             # (TQ, D)   f32
    p = pool(pc_ref[...])                             # (TQ*K, D) f32
    qrep_ref[...] = q.astype(qrep_ref.dtype)
    prep_ref[...] = p.astype(prep_ref.dtype)

    # MXU-based grouped score: full cross product p @ q^T, then keep only the
    # column that owns each key row (row // K == col), reduced over lanes.
    s_full = jax.lax.dot_general(
        p.astype(jnp.bfloat16), q.astype(jnp.bfloat16),
        dimension_numbers=(((1,), (1,)), ((), ())),
        preferred_element_type=jnp.float32)           # (TQ*K, TQ)
    rows = jax.lax.broadcasted_iota(jnp.int32, s_full.shape, 0)
    cols = jax.lax.broadcasted_iota(jnp.int32, s_full.shape, 1)
    own = (rows >= cols * k_per_query) & (rows < (cols + 1) * k_per_query)
    score_ref[...] = jnp.sum(jnp.where(own, s_full, jnp.float32(0.0)),
                             axis=-1, keepdims=True)  # (TQ*K, 1)


def _choose_query_tile(bq, k):
    """Pick a query tile so the key tile has ~256 rows (MXU M dim), dividing Bq."""
    target = max(1, 256 // max(k, 1))
    tile = max(1, min(bq, target))
    while bq % tile:
        tile -= 1
    return max(tile, 1)


def fused_pool_and_rerank(q_cls, p_cls, w1, b1, w2, b2):
    """Single pallas_call: pooler(queries), pooler(keys), grouped scores."""
    Bq, D = q_cls.shape
    Bp = p_cls.shape[0]
    if Bp % Bq != 0:
        raise ValueError(
            f"keys batch ({Bp}) must be a multiple of query batch ({Bq})")
    K = Bp // Bq

    # bf16 weights: halves weight DMA/VMEM and feeds the MXU at bf16 peak.
    w1_bf = w1.astype(jnp.bfloat16)
    w2_bf = w2.astype(jnp.bfloat16)
    b1_f = b1.reshape(1, D).astype(jnp.float32)
    b2_f = b2.reshape(1, D).astype(jnp.float32)

    tile_q = _choose_query_tile(Bq, K)
    tile_p = tile_q * K
    grid = (Bq // tile_q,)

    kernel = functools.partial(_fused_rerank_kernel, k_per_query=K)

    q_reps, p_reps, scores_col = pl.pallas_call(
        kernel,
        out_shape=(
            jax.ShapeDtypeStruct((Bq, D), jnp.float32),
            jax.ShapeDtypeStruct((Bp, D), jnp.float32),
            jax.ShapeDtypeStruct((Bp, 1), jnp.float32),
        ),
        grid=grid,
        in_specs=[
            pl.BlockSpec((tile_q, D), lambda i: (i, 0)),   # query CLS tile
            pl.BlockSpec((tile_p, D), lambda i: (i, 0)),   # key CLS tile
            pl.BlockSpec((D, D), lambda i: (0, 0)),        # W1 (resident)
            pl.BlockSpec((1, D), lambda i: (0, 0)),        # b1 (resident)
            pl.BlockSpec((D, D), lambda i: (0, 0)),        # W2 (resident)
            pl.BlockSpec((1, D), lambda i: (0, 0)),        # b2 (resident)
        ],
        out_specs=[
            pl.BlockSpec((tile_q, D), lambda i: (i, 0)),   # q_reps
            pl.BlockSpec((tile_p, D), lambda i: (i, 0)),   # p_reps
            pl.BlockSpec((tile_p, 1), lambda i: (i, 0)),   # scores (flat)
        ],
        compiler_params=pltpu.CompilerParams(
            dimension_semantics=("parallel",),             # megacore on v7x
            vmem_limit_bytes=48 * 1024 * 1024,             # safe on 64 MiB v7x
        ),
    )(q_cls, p_cls, w1_bf, b1_f, w2_bf, b2_f)

    scores = scores_col.reshape(Bq, K)
    return q_reps, p_reps, scores


# ---------------------------------------------------------------------------
# DenseRerankModel.forward (negatives_x_device = False, pooler is tied)
# ---------------------------------------------------------------------------
def dense_rerank_forward(query_hidden, keys_hidden, keys_label_mask, params):
    w1, b1, w2, b2 = params
    # encode(): CLS token then LinearPooler (same pooler for query and keys).
    q_cls = query_hidden[:, 0, :]
    p_cls = keys_hidden[:, 0, :]

    q_reps, p_reps, scores = fused_pool_and_rerank(q_cls, p_cls, w1, b1, w2, b2)

    return {
        "loss": jnp.zeros((1,), dtype=jnp.float32),  # torch.FloatTensor([0])
        "scores": scores,                            # (Bq, K)
        "target": keys_label_mask,                   # keys['label_mask'] pass-through
        "q_reps": q_reps,
        "p_reps": p_reps,
    }


# ---------------------------------------------------------------------------
# Pure-JAX f32 reference for verification (kernel uses bf16 MXU operands with
# f32 accumulation, so comparison uses a bf16-level tolerance).
# ---------------------------------------------------------------------------
def _ref_forward(query_hidden, keys_hidden, params):
    w1, b1, w2, b2 = params

    def pool(x):
        h = jnp.maximum(x @ w1 + b1.reshape(-1), 0.0)
        return h @ w2 + b2.reshape(-1)

    q_reps = pool(query_hidden[:, 0, :].astype(jnp.float32))
    p_reps = pool(keys_hidden[:, 0, :].astype(jnp.float32))
    Bq, D = q_reps.shape
    scores = jnp.einsum("bd,bkd->bk", q_reps, p_reps.reshape(Bq, -1, D))
    return q_reps, p_reps, scores


if __name__ == "__main__":
    key = jax.random.PRNGKey(0)
    Bq, K, S, H = 2, 4, 8, 32       # 2 queries, 4 candidate keys per query
    Bp = Bq * K

    k1, k2, k3, k4, k5, k6 = jax.random.split(key, 6)
    # Stand-ins for lm(...).last_hidden_state of query / keys.
    query_hidden = jax.random.normal(k1, (Bq, S, H), dtype=jnp.float32)
    keys_hidden = jax.random.normal(k2, (Bp, S, H), dtype=jnp.float32)
    keys_label_mask = (jnp.arange(Bp, dtype=jnp.int32) % K == 0).astype(jnp.int32)

    # LinearPooler params: Linear(H,H), ReLU, Linear(H,H)  (deterministic init)
    w1 = jax.random.normal(k3, (H, H), dtype=jnp.float32) * 0.05
    b1 = jax.random.normal(k4, (1, H), dtype=jnp.float32) * 0.05
    w2 = jax.random.normal(k5, (H, H), dtype=jnp.float32) * 0.05
    b2 = jax.random.normal(k6, (1, H), dtype=jnp.float32) * 0.05
    params = (w1, b1, w2, b2)

    out = dense_rerank_forward(query_hidden, keys_hidden, keys_label_mask, params)
    jax.block_until_ready(out)

    q_ref, p_ref, s_ref = _ref_forward(query_hidden, keys_hidden, params)
    # bf16 MXU operands with f32 accumulation -> bf16-level tolerance vs f32 ref.
    assert jnp.allclose(out["q_reps"], q_ref, atol=2e-2, rtol=2e-2)
    assert jnp.allclose(out["p_reps"], p_ref, atol=2e-2, rtol=2e-2)
    assert jnp.allclose(out["scores"], s_ref, atol=2e-2, rtol=2e-2)
    assert out["scores"].shape == (Bq, K)
    assert out["loss"].shape == (1,)
    assert out["target"].shape == (Bp,)

    print("KERNEL_OK")
</pallas_src>

<mosaic_0001>
module attributes {stable_mosaic.version = 11 : i64} {
  func.func @_fused_rerank_kernel(%arg0: i32, %arg1: memref<2x32xf32, #tpu.memory_space<vmem>>, %arg2: memref<8x32xf32, #tpu.memory_space<vmem>>, %arg3: memref<32x32xbf16, #tpu.memory_space<vmem>>, %arg4: memref<1x32xf32, #tpu.memory_space<vmem>>, %arg5: memref<32x32xbf16, #tpu.memory_space<vmem>>, %arg6: memref<1x32xf32, #tpu.memory_space<vmem>>, %arg7: memref<2x32xf32, #tpu.memory_space<vmem>>, %arg8: memref<8x32xf32, #tpu.memory_space<vmem>>, %arg9: memref<8x1xf32, #tpu.memory_space<vmem>>) attributes {dimension_semantics = [#tpu.dimension_semantics<parallel>], iteration_bounds = array<i64: 1>, scalar_prefetch = 0 : i64, scratch_operands = 0 : i64, tpu.core_type = #tpu.core_type<tc>, window_params = [{transform_indices = @transform_0, window_bounds = array<i64: 2, 32>}, {transform_indices = @transform_1, window_bounds = array<i64: 8, 32>}, {pipeline_mode = #tpu.pipeline_mode<synchronous>, transform_indices = @transform_2, window_bounds = array<i64: 32, 32>}, {pipeline_mode = #tpu.pipeline_mode<synchronous>, transform_indices = @transform_3, window_bounds = array<i64: 1, 32>}, {pipeline_mode = #tpu.pipeline_mode<synchronous>, transform_indices = @transform_4, window_bounds = array<i64: 32, 32>}, {pipeline_mode = #tpu.pipeline_mode<synchronous>, transform_indices = @transform_5, window_bounds = array<i64: 1, 32>}, {transform_indices = @transform_6, window_bounds = array<i64: 2, 32>}, {transform_indices = @transform_7, window_bounds = array<i64: 8, 32>}, {transform_indices = @transform_8, window_bounds = array<i64: 8, 1>}]} {
    %c0 = arith.constant 0 : index
    %c0_0 = arith.constant 0 : index
    %0 = vector.load %arg3[%c0, %c0_0] : memref<32x32xbf16, #tpu.memory_space<vmem>>, vector<32x32xbf16>
    %c0_1 = arith.constant 0 : index
    %c0_2 = arith.constant 0 : index
    %1 = vector.load %arg5[%c0_1, %c0_2] : memref<32x32xbf16, #tpu.memory_space<vmem>>, vector<32x32xbf16>
    %c0_3 = arith.constant 0 : index
    %c0_4 = arith.constant 0 : index
    %2 = vector.load %arg4[%c0_3, %c0_4] : memref<1x32xf32, #tpu.memory_space<vmem>>, vector<1x32xf32>
    %c0_5 = arith.constant 0 : index
    %c0_6 = arith.constant 0 : index
    %3 = vector.load %arg6[%c0_5, %c0_6] : memref<1x32xf32, #tpu.memory_space<vmem>>, vector<1x32xf32>
    %c0_7 = arith.constant 0 : index
    %c0_8 = arith.constant 0 : index
    %4 = vector.load %arg1[%c0_7, %c0_8] : memref<2x32xf32, #tpu.memory_space<vmem>>, vector<2x32xf32>
    %5 = arith.truncf %4 : vector<2x32xf32> to vector<2x32xbf16>
    %cst = arith.constant dense<0.000000e+00> : vector<2x32xf32>
    %6 = tpu.matmul %5, %0, %cst {dimension_numbers = #tpu.dot_dimension_numbers<[1], [0], [0], [1], [0, 0, 1, 1], [], []>} : vector<2x32xbf16>, vector<32x32xbf16>, vector<2x32xf32> -> vector<2x32xf32>
    %7 = vector.broadcast %2 : vector<1x32xf32> to vector<2x32xf32>
    %8 = arith.addf %6, %7 : vector<2x32xf32>
    %cst_9 = arith.constant 0.000000e+00 : f32
    %9 = vector.broadcast %cst_9 : f32 to vector<2x32xf32>
    %10 = arith.maximumf %8, %9 : vector<2x32xf32>
    %11 = arith.truncf %10 : vector<2x32xf32> to vector<2x32xbf16>
    %cst_10 = arith.constant dense<0.000000e+00> : vector<2x32xf32>
    %12 = tpu.matmul %11, %1, %cst_10 {dimension_numbers = #tpu.dot_dimension_numbers<[1], [0], [0], [1], [0, 0, 1, 1], [], []>} : vector<2x32xbf16>, vector<32x32xbf16>, vector<2x32xf32> -> vector<2x32xf32>
    %13 = vector.broadcast %3 : vector<1x32xf32> to vector<2x32xf32>
    %14 = arith.addf %12, %13 : vector<2x32xf32>
    %c0_11 = arith.constant 0 : index
    %c0_12 = arith.constant 0 : index
    %15 = vector.load %arg2[%c0_11, %c0_12] : memref<8x32xf32, #tpu.memory_space<vmem>>, vector<8x32xf32>
    %16 = arith.truncf %15 : vector<8x32xf32> to vector<8x32xbf16>
    %cst_13 = arith.constant dense<0.000000e+00> : vector<8x32xf32>
    %17 = tpu.matmul %16, %0, %cst_13 {dimension_numbers = #tpu.dot_dimension_numbers<[1], [0], [0], [1], [0, 0, 1, 1], [], []>} : vector<8x32xbf16>, vector<32x32xbf16>, vector<8x32xf32> -> vector<8x32xf32>
    %18 = vector.broadcast %2 : vector<1x32xf32> to vector<8x32xf32>
    %19 = arith.addf %17, %18 : vector<8x32xf32>
    %cst_14 = arith.constant 0.000000e+00 : f32
    %20 = vector.broadcast %cst_14 : f32 to vector<8x32xf32>
    %21 = arith.maximumf %19, %20 : vector<8x32xf32>
    %22 = arith.truncf %21 : vector<8x32xf32> to vector<8x32xbf16>
    %cst_15 = arith.constant dense<0.000000e+00> : vector<8x32xf32>
    %23 = tpu.matmul %22, %1, %cst_15 {dimension_numbers = #tpu.dot_dimension_numbers<[1], [0], [0], [1], [0, 0, 1, 1], [], []>} : vector<8x32xbf16>, vector<32x32xbf16>, vector<8x32xf32> -> vector<8x32xf32>
    %24 = vector.broadcast %3 : vector<1x32xf32> to vector<8x32xf32>
    %25 = arith.addf %23, %24 : vector<8x32xf32>
    %c0_16 = arith.constant 0 : index
    %c0_17 = arith.constant 0 : index
    %26 = vector.load %arg7[%c0_16, %c0_17] : memref<2x32xf32, #tpu.memory_space<vmem>>, vector<2x32xf32>
    tpu.vector_store %arg7[%c0_16, %c0_17], %14 {strides = array<i32>} : memref<2x32xf32, #tpu.memory_space<vmem>>, vector<2x32xf32>,
    %c0_18 = arith.constant 0 : index
    %c0_19 = arith.constant 0 : index
    %27 = vector.load %arg8[%c0_18, %c0_19] : memref<8x32xf32, #tpu.memory_space<vmem>>, vector<8x32xf32>
    tpu.vector_store %arg8[%c0_18, %c0_19], %25 {strides = array<i32>} : memref<8x32xf32, #tpu.memory_space<vmem>>, vector<8x32xf32>,
    %28 = arith.truncf %25 : vector<8x32xf32> to vector<8x32xbf16>
    %29 = arith.truncf %14 : vector<2x32xf32> to vector<2x32xbf16>
    %cst_20 = arith.constant dense<0.000000e+00> : vector<8x2xf32>
    %30 = tpu.matmul %28, %29, %cst_20 {dimension_numbers = #tpu.dot_dimension_numbers<[1], [1], [0], [0], [0, 0, 1, 0], [], []>} : vector<8x32xbf16>, vector<2x32xbf16>, vector<8x2xf32> -> vector<8x2xf32>
    %31 = tpu.iota {dimensions = array<i32: 0>} : vector<8x2xi32>
    %32 = tpu.iota {dimensions = array<i32: 1>} : vector<8x2xi32>
    %c4_i32 = arith.constant 4 : i32
    %33 = vector.broadcast %c4_i32 : i32 to vector<8x2xi32>
    %34 = arith.muli %32, %33 : vector<8x2xi32>
    %35 = arith.cmpi sge, %31, %34 : vector<8x2xi32>
    %c1_i32 = arith.constant 1 : i32
    %36 = vector.broadcast %c1_i32 : i32 to vector<8x2xi32>
    %37 = arith.addi %32, %36 : vector<8x2xi32>
    %c4_i32_21 = arith.constant 4 : i32
    %38 = vector.broadcast %c4_i32_21 : i32 to vector<8x2xi32>
    %39 = arith.muli %37, %38 : vector<8x2xi32>
    %40 = arith.cmpi slt, %31, %39 : vector<8x2xi32>
    %41 = arith.andi %35, %40 : vector<8x2xi1>
    %cst_22 = arith.constant 0.000000e+00 : f32
    %42 = vector.broadcast %cst_22 : f32 to vector<8x2xf32>
    %43 = arith.select %41, %30, %42 : vector<8x2xi1>, vector<8x2xf32>
    %cst_23 = arith.constant dense<0.000000e+00> : vector<8xf32>
    %44 = vector.multi_reduction <add>, %43, %cst_23 [1] : vector<8x2xf32> to vector<8xf32>
    %45 = vector.shape_cast %44 : vector<8xf32> to vector<8x1xf32>
    %c0_24 = arith.constant 0 : index
    %c0_25 = arith.constant 0 : index
    %46 = vector.load %arg9[%c0_24, %c0_25] : memref<8x1xf32, #tpu.memory_space<vmem>>, vector<8x1xf32>
    tpu.vector_store %arg9[%c0_24, %c0_25], %45 {strides = array<i32>} : memref<8x1xf32, #tpu.memory_space<vmem>>, vector<8x1xf32>,
    return
  }
  func.func @transform_0(%arg0: i32) -> (i32, i32) {
    %c0_i32 = arith.constant 0 : i32
    %c0_i32_0 = arith.constant 0 : i32
    return %arg0, %c0_i32 : i32, i32
  }
  func.func @transform_1(%arg0: i32) -> (i32, i32) {
    %c0_i32 = arith.constant 0 : i32
    %c0_i32_0 = arith.constant 0 : i32
    return %arg0, %c0_i32 : i32, i32
  }
  func.func @transform_2(%arg0: i32) -> (i32, i32) {
    %c0_i32 = arith.constant 0 : i32
    %c0_i32_0 = arith.constant 0 : i32
    %c0_i32_1 = arith.constant 0 : i32
    return %c0_i32, %c0_i32_0 : i32, i32
  }
  func.func @transform_3(%arg0: i32) -> (i32, i32) {
    %c0_i32 = arith.constant 0 : i32
    %c0_i32_0 = arith.constant 0 : i32
    %c0_i32_1 = arith.constant 0 : i32
    return %c0_i32, %c0_i32_0 : i32, i32
  }
  func.func @transform_4(%arg0: i32) -> (i32, i32) {
    %c0_i32 = arith.constant 0 : i32
    %c0_i32_0 = arith.constant 0 : i32
    %c0_i32_1 = arith.constant 0 : i32
    return %c0_i32, %c0_i32_0 : i32, i32
  }
  func.func @transform_5(%arg0: i32) -> (i32, i32) {
    %c0_i32 = arith.constant 0 : i32
    %c0_i32_0 = arith.constant 0 : i32
    %c0_i32_1 = arith.constant 0 : i32
    return %c0_i32, %c0_i32_0 : i32, i32
  }
  func.func @transform_6(%arg0: i32) -> (i32, i32) {
    %c0_i32 = arith.constant 0 : i32
    %c0_i32_0 = arith.constant 0 : i32
    return %arg0, %c0_i32 : i32, i32
  }
  func.func @transform_7(%arg0: i32) -> (i32, i32) {
    %c0_i32 = arith.constant 0 : i32
    %c0_i32_0 = arith.constant 0 : i32
    return %arg0, %c0_i32 : i32, i32
  }
  func.func @transform_8(%arg0: i32) -> (i32, i32) {
    %c0_i32 = arith.constant 0 : i32
    %c0_i32_0 = arith.constant 0 : i32
    return %arg0, %c0_i32 : i32, i32
  }
}

</mosaic_0001>

<llo_original>
// kernel: tpu_custom_call.1
$region0: #{tpu_custom_call.1}
  #allocation0 [shape = 'u32[]', space=smem, size = 0x4, offset = 0x4, fixed_abs, tag = 'smem constant byte address 0x4 - core index']
  #allocation1 [shape = 'u32[144,128]{1,0:T(1,128)}', space=vmem, size = 0x12000, scoped, tag = 'internal scratch']
  %s0 = inlined_call_operand.hbm [shape: f32[2,32], index: 0, kind: input, shape index: {}]
  %s1 = inlined_call_operand.hbm [shape: f32[8,32], index: 1, kind: input, shape index: {}]
  %s2 = inlined_call_operand.hbm [shape: bf16[32,32], index: 2, kind: input, shape index: {}]
  %s3 = inlined_call_operand.vmem [shape: f32[1,32], index: 3, kind: input, shape index: {}]
  %s4 = inlined_call_operand.hbm [shape: bf16[32,32], index: 4, kind: input, shape index: {}]
  %s5 = inlined_call_operand.vmem [shape: f32[1,32], index: 5, kind: input, shape index: {}]
  %s6 = inlined_call_operand.hbm [shape: f32[2,32], index: 6, kind: output, shape index: {0}]
  %s7 = inlined_call_operand.hbm [shape: f32[8,32], index: 7, kind: output, shape index: {1}]
  %s8 = inlined_call_operand.vmem [shape: f32[8,1], index: 8, kind: output, shape index: {2}]
  %9 = xla_tuple %s6, %s7, %s8
  %s10 = sld [smem:[#allocation0]]
  $region66: #{tpu_custom_call.1} parent=0
    _
  %s12 = ssub.s32 1, %s10
  %s13 = scalar_select 0, %s12, %s10
  $region1: #{tpu_custom_call.1} parent=0
    #allocation2 [shape = 'u8[1024]{0}', space=vmem, size = 0x400, scoped, tag = 'input window, operand 0, single buffered']
    #allocation3 [shape = 's32[1]{0}', space=sflag, size = 0x4, scoped, tag = 'scoped memory for tpu_custom_call.1']
    #allocation4 [shape = 's32[1]{0}', space=sflag, size = 0x4, scoped, tag = 'scoped memory for tpu_custom_call.1']
    #allocation5 [shape = 'u8[4096]{0}', space=vmem, size = 0x1000, scoped, tag = 'input window, operand 1, single buffered']
    #allocation6 [shape = 's32[1]{0}', space=sflag, size = 0x4, scoped, tag = 'scoped memory for tpu_custom_call.1']
    #allocation7 [shape = 'u8[8192]{0}', space=vmem, size = 0x2000, scoped, tag = 'input window, operand 2, single buffered']
    #allocation8 [shape = 'u8[8192]{0}', space=vmem, size = 0x2000, scoped, tag = 'input window, operand 4, single buffered']
    #allocation9 [shape = 's32[1]{0}', space=sflag, size = 0x4, scoped, tag = 'scoped memory for tpu_custom_call.1']
    #allocation10 [shape = 'u8[1024]{0}', space=vmem, size = 0x400, scoped, tag = 'output window, operand 0, single buffered']
    #allocation11 [shape = 'u8[4096]{0}', space=vmem, size = 0x1000, scoped, tag = 'output window, operand 1, single buffered']
    #allocation12 [shape = 's32[1]{0}', space=sflag, size = 0x4, scoped, tag = 'scoped memory for tpu_custom_call.1']
    %14 = vsyncpa [#allocation3], 0
    %15 = vsyncpa [#allocation6], 0
    %16 = vsyncpa [#allocation9], 0
    %17 = vsyncpa [#allocation4], 0
    %18 = vsyncpa [#allocation12], 0
    // Predicated region
    $region2: #{tpu_custom_call.1} parent=1 // pred_check
      _
    $region3: #{tpu_custom_call.1} parent=1 // pred_check_branch
      %20 = sbr.rel (0) target = $region5
    $region4: #{tpu_custom_call.1} parent=1 // pred_region
      %s22 = ssub.s32 32, 32
      %23 = vsyncadd [#allocation3], %s22
      %s25 = sshll.u32 [#allocation2], 4
      %s26 = int_to_ptr.vmem [resolvable:$true] %s25
      %28 = dma.hbm_to_vmem [thread:$0]  %s0, 32, %s26, [#allocation3]
    $region5: #{tpu_custom_call.1} parent=1 // pred_fallthru
      _
    // Predicated region
    $region6: #{tpu_custom_call.1} parent=1 // pred_check
      _
    $region7: #{tpu_custom_call.1} parent=1 // pred_check_branch
      %30 = sbr.rel (0) target = $region9
    $region8: #{tpu_custom_call.1} parent=1 // pred_region
      %s32 = ssub.s32 128, 128
      %33 = vsyncadd [#allocation6], %s32
      %s35 = sshll.u32 [#allocation5], 4
      %s36 = int_to_ptr.vmem [resolvable:$true] %s35
      %38 = dma.hbm_to_vmem [thread:$0]  %s1, 128, %s36, [#allocation6]
    $region9: #{tpu_custom_call.1} parent=1 // pred_fallthru
      _
    // Predicated region
    $region10: #{tpu_custom_call.1} parent=1 // pred_check
      _
    $region11: #{tpu_custom_call.1} parent=1 // pred_check_branch
      %40 = sbr.rel (0) target = $region13
    $region12: #{tpu_custom_call.1} parent=1 // pred_region
      %s42 = ssub.s32 256, 256
      %43 = vsyncadd [#allocation6], %s42
      %s44 = sshll.u32 [#allocation7], 4
      %s45 = int_to_ptr.vmem [resolvable:$true] %s44
      %50 = dma.hbm_to_vmem [thread:$0]  %s2, 256, %s45, [#allocation6], 64, 64, 4
    $region13: #{tpu_custom_call.1} parent=1 // pred_fallthru
      _
    // Predicated region
    $region14: #{tpu_custom_call.1} parent=1 // pred_check
      _
    $region15: #{tpu_custom_call.1} parent=1 // pred_check_branch
      %52 = sbr.rel (0) target = $region17
    $region16: #{tpu_custom_call.1} parent=1 // pred_region
      _
    $region17: #{tpu_custom_call.1} parent=1 // pred_fallthru
      _
    // Predicated region
    $region18: #{tpu_custom_call.1} parent=1 // pred_check
      _
    $region19: #{tpu_custom_call.1} parent=1 // pred_check_branch
      %54 = sbr.rel (0) target = $region21
    $region20: #{tpu_custom_call.1} parent=1 // pred_region
      %s56 = ssub.s32 256, 256
      %57 = vsyncadd [#allocation9], %s56
      %s58 = sshll.u32 [#allocation8], 4
      %s59 = int_to_ptr.vmem [resolvable:$true] %s58
      %64 = dma.hbm_to_vmem [thread:$0]  %s4, 256, %s59, [#allocation9], 64, 64, 4
    $region21: #{tpu_custom_call.1} parent=1 // pred_fallthru
      _
    // Predicated region
    $region22: #{tpu_custom_call.1} parent=1 // pred_check
      _
    $region23: #{tpu_custom_call.1} parent=1 // pred_check_branch
      %66 = sbr.rel (0) target = $region25
    $region24: #{tpu_custom_call.1} parent=1 // pred_region
      _
    $region25: #{tpu_custom_call.1} parent=1 // pred_fallthru
      _
    // Predicated region
    $region26: #{tpu_custom_call.1} parent=1 // pred_check
      _
    $region27: #{tpu_custom_call.1} parent=1 // pred_check_branch
      %68 = sbr.rel (0) target = $region29
    $region28: #{tpu_custom_call.1} parent=1 // pred_region
      %69 = dma.done [#allocation3], 32
    $region29: #{tpu_custom_call.1} parent=1 // pred_fallthru
      _
    // Predicated region
    $region30: #{tpu_custom_call.1} parent=1 // pred_check
      _
    $region31: #{tpu_custom_call.1} parent=1 // pred_check_branch
      %71 = sbr.rel (0) target = $region33
    $region32: #{tpu_custom_call.1} parent=1 // pred_region
      %72 = dma.done [#allocation6], 128
    $region33: #{tpu_custom_call.1} parent=1 // pred_fallthru
      _
    // Predicated region
    $region34: #{tpu_custom_call.1} parent=1 // pred_check
      _
    $region35: #{tpu_custom_call.1} parent=1 // pred_check_branch
      %74 = sbr.rel (0) target = $region37
    $region36: #{tpu_custom_call.1} parent=1 // pred_region
      %75 = dma.done [#allocation6], 256
    $region37: #{tpu_custom_call.1} parent=1 // pred_fallthru
      _
    // Predicated region
    $region38: #{tpu_custom_call.1} parent=1 // pred_check
      _
    $region39: #{tpu_custom_call.1} parent=1 // pred_check_branch
      %77 = sbr.rel (0) target = $region41
    $region40: #{tpu_custom_call.1} parent=1 // pred_region
      %78 = dma.done [#allocation9], 256
    $region41: #{tpu_custom_call.1} parent=1 // pred_fallthru
      _
    %v80 = vld [vmem:[#allocation7] sm:$0xf]
    %v81 = vld [vmem:[#allocation7 + $0x4] sm:$0xf]
    %v82 = vld [vmem:[#allocation7 + $0x8] sm:$0xf]
    %v83 = vld [vmem:[#allocation7 + $0xc] sm:$0xf]
    %v84 = vld [vmem:[#allocation8] sm:$0xf]
    %v85 = vld [vmem:[#allocation8 + $0x4] sm:$0xf]
    %v86 = vld [vmem:[#allocation8 + $0x8] sm:$0xf]
    %v87 = vld [vmem:[#allocation8 + $0xc] sm:$0xf]
    %v88 = vld [vmem:[%s3] sm:$0x1]
    %v89 = vld [vmem:[%s5] sm:$0x1]
    %v90 = vld [vmem:[#allocation2] sm:$0x3]
    %v91 = vpack.c.bf16 %v90, %v90
    %v93 = vlaneseq
    %v94 = vshrl.u32 %v93, 7
    %v95 = vsub.s32 0, %v94
    %v96 = vrot.slane %v88, %v95
    %v102 = vunpack.c.l.b16 %v80
    %v103 = vunpack.c.l.b16 %v81
    %v104 = vunpack.c.l.b16 %v82
    %v105 = vunpack.c.l.b16 %v83
    %v106 = vpack.c.b16 %v103, %v102
    %v107 = vpack.c.b16 %v105, %v104
    %vm110 = vcmask 261120
    %v112 = vsel %vm110, %v91, 0
    %114 = vmatprep.subr.bf16.mxu0 0
    %115 = vmatpush1.bf16.msra.mxu0 0
    %116 = vmatprep.subr.bf16.mxu0 0
    %117 = vmatpush1.bf16.msra.mxu0 0
    %118 = vmatprep.subr.bf16.mxu0 0
    %119 = vmatpush1.bf16.msra.mxu0 0
    %120 = vmatprep.subr.bf16.mxu0 0
    %121 = vmatpush1.bf16.msra.mxu0 0
    %122 = vmatprep.subr.bf16.mxu0 0
    %123 = vmatpush1.bf16.msra.mxu0 0
    %124 = vmatprep.subr.bf16.mxu0 0
    %125 = vmatpush1.bf16.msra.mxu0 0
    %126 = vmatprep.subr.bf16.mxu0 0
    %127 = vmatpush1.bf16.msra.mxu0 %v107
    %128 = vmatprep.subr.bf16.mxu0 0
    %129 = vmatpush1.bf16.msra.mxu0 %v106
    %130 = vmatprep.subr.bf16.mxu0 0
    %131 = vmatpush2.bf16.msra.mxu0 0
    %132 = vmatprep.subr.bf16.mxu0 0
    %133 = vmatpush2.bf16.msra.mxu0 0
    %134 = vmatprep.subr.bf16.mxu0 0
    %135 = vmatpush2.bf16.msra.mxu0 0
    %136 = vmatprep.subr.bf16.mxu0 0
    %137 = vmatpush2.bf16.msra.mxu0 0
    %138 = vmatprep.subr.bf16.mxu0 0
    %139 = vmatpush2.bf16.msra.mxu0 0
    %140 = vmatprep.subr.bf16.mxu0 0
    %141 = vmatpush2.bf16.msra.mxu0 0
    %142 = vmatprep.subr.bf16.mxu0 0
    %143 = vmatpush2.bf16.msra.mxu0 0
    %144 = vmatprep.subr.bf16.mxu0 0
    %145 = vmatpush2.bf16.msra.mxu0 0
    %146 = vmatprep.mubr.bf16.mxu0 0
    %147 = vmatmul.mubr.bf16.gmra.mxu0 %v112
    %v148 = vpop.f32.mrf.mxu0
    %v149 = vadd.f32 %v96, %v148
    %v150 = vpop.f32.mrf.mxu0
    %v151 = vpop.f32.mrf.mxu0
    %v152 = vpop.f32.mrf.mxu0
    %153 = vdwg.mxu0
    %v154 = vmax.f32 %v149, 0.0
    %v155 = vpack.c.bf16 %v154, %v154
    %v157 = vlaneseq
    %v158 = vshrl.u32 %v157, 7
    %v159 = vsub.s32 0, %v158
    %v160 = vrot.slane %v89, %v159
    %v166 = vunpack.c.l.b16 %v84
    %v167 = vunpack.c.l.b16 %v85
    %v168 = vunpack.c.l.b16 %v86
    %v169 = vunpack.c.l.b16 %v87
    %v170 = vpack.c.b16 %v167, %v166
    %v171 = vpack.c.b16 %v169, %v168
    %v175 = vsel %vm110, %v155, 0
    %177 = vmatprep.subr.bf16.mxu0 0
    %178 = vmatpush1.bf16.msra.mxu0 0
    %179 = vmatprep.subr.bf16.mxu0 0
    %180 = vmatpush1.bf16.msra.mxu0 0
    %181 = vmatprep.subr.bf16.mxu0 0
    %182 = vmatpush1.bf16.msra.mxu0 0
    %183 = vmatprep.subr.bf16.mxu0 0
    %184 = vmatpush1.bf16.msra.mxu0 0
    %185 = vmatprep.subr.bf16.mxu0 0
    %186 = vmatpush1.bf16.msra.mxu0 0
    %187 = vmatprep.subr.bf16.mxu0 0
    %188 = vmatpush1.bf16.msra.mxu0 0
    %189 = vmatprep.subr.bf16.mxu0 0
    %190 = vmatpush1.bf16.msra.mxu0 %v171
    %191 = vmatprep.subr.bf16.mxu0 0
    %192 = vmatpush1.bf16.msra.mxu0 %v170
    %193 = vmatprep.subr.bf16.mxu0 0
    %194 = vmatpush2.bf16.msra.mxu0 0
    %195 = vmatprep.subr.bf16.mxu0 0
    %196 = vmatpush2.bf16.msra.mxu0 0
    %197 = vmatprep.subr.bf16.mxu0 0
    %198 = vmatpush2.bf16.msra.mxu0 0
    %199 = vmatprep.subr.bf16.mxu0 0
    %200 = vmatpush2.bf16.msra.mxu0 0
    %201 = vmatprep.subr.bf16.mxu0 0
    %202 = vmatpush2.bf16.msra.mxu0 0
    %203 = vmatprep.subr.bf16.mxu0 0
    %204 = vmatpush2.bf16.msra.mxu0 0
    %205 = vmatprep.subr.bf16.mxu0 0
    %206 = vmatpush2.bf16.msra.mxu0 0
    %207 = vmatprep.subr.bf16.mxu0 0
    %208 = vmatpush2.bf16.msra.mxu0 0
    %209 = vmatprep.mubr.bf16.mxu0 0
    %210 = vmatmul.mubr.bf16.gmra.mxu0 %v175
    %v211 = vpop.f32.mrf.mxu0
    %v212 = vadd.f32 %v160, %v211
    %v213 = vpop.f32.mrf.mxu0
    %v214 = vpop.f32.mrf.mxu0
    %v215 = vpop.f32.mrf.mxu0
    %216 = vdwg.mxu0
    %v217 = vld [vmem:[#allocation5] sm:$0xff]
    %v218 = vpack.c.bf16 %v217, %v217
    %v220 = vsel %vm110, %v218, 0
    %222 = vmatprep.subr.bf16.mxu0 0
    %223 = vmatpush1.bf16.msra.mxu0 0
    %224 = vmatprep.subr.bf16.mxu0 0
    %225 = vmatpush1.bf16.msra.mxu0 0
    %226 = vmatprep.subr.bf16.mxu0 0
    %227 = vmatpush1.bf16.msra.mxu0 0
    %228 = vmatprep.subr.bf16.mxu0 0
    %229 = vmatpush1.bf16.msra.mxu0 0
    %230 = vmatprep.subr.bf16.mxu0 0
    %231 = vmatpush1.bf16.msra.mxu0 0
    %232 = vmatprep.subr.bf16.mxu0 0
    %233 = vmatpush1.bf16.msra.mxu0 0
    %234 = vmatprep.subr.bf16.mxu0 0
    %235 = vmatpush1.bf16.msra.mxu0 %v107
    %236 = vmatprep.subr.bf16.mxu0 0
    %237 = vmatpush1.bf16.msra.mxu0 %v106
    %238 = vmatprep.subr.bf16.mxu0 0
    %239 = vmatpush2.bf16.msra.mxu0 0
    %240 = vmatprep.subr.bf16.mxu0 0
    %241 = vmatpush2.bf16.msra.mxu0 0
    %242 = vmatprep.subr.bf16.mxu0 0
    %243 = vmatpush2.bf16.msra.mxu0 0
    %244 = vmatprep.subr.bf16.mxu0 0
    %245 = vmatpush2.bf16.msra.mxu0 0
    %246 = vmatprep.subr.bf16.mxu0 0
    %247 = vmatpush2.bf16.msra.mxu0 0
    %248 = vmatprep.subr.bf16.mxu0 0
    %249 = vmatpush2.bf16.msra.mxu0 0
    %250 = vmatprep.subr.bf16.mxu0 0
    %251 = vmatpush2.bf16.msra.mxu0 0
    %252 = vmatprep.subr.bf16.mxu0 0
    %253 = vmatpush2.bf16.msra.mxu0 0
    %254 = vmatprep.mubr.bf16.mxu0 0
    %255 = vmatmul.mubr.bf16.gmra.mxu0 %v220
    %v256 = vpop.f32.mrf.mxu0
    %v257 = vadd.f32 %v96, %v256
    %v258 = vpop.f32.mrf.mxu0
    %v259 = vpop.f32.mrf.mxu0
    %v260 = vpop.f32.mrf.mxu0
    %261 = vdwg.mxu0
    %v262 = vmax.f32 %v257, 0.0
    %v263 = vpack.c.bf16 %v262, %v262
    %v265 = vsel %vm110, %v263, 0
    %267 = vmatprep.subr.bf16.mxu0 0
    %268 = vmatpush1.bf16.msra.mxu0 0
    %269 = vmatprep.subr.bf16.mxu0 0
    %270 = vmatpush1.bf16.msra.mxu0 0
    %271 = vmatprep.subr.bf16.mxu0 0
    %272 = vmatpush1.bf16.msra.mxu0 0
    %273 = vmatprep.subr.bf16.mxu0 0
    %274 = vmatpush1.bf16.msra.mxu0 0
    %275 = vmatprep.subr.bf16.mxu0 0
    %276 = vmatpush1.bf16.msra.mxu0 0
    %277 = vmatprep.subr.bf16.mxu0 0
    %278 = vmatpush1.bf16.msra.mxu0 0
    %279 = vmatprep.subr.bf16.mxu0 0
    %280 = vmatpush1.bf16.msra.mxu0 %v171
    %281 = vmatprep.subr.bf16.mxu0 0
    %282 = vmatpush1.bf16.msra.mxu0 %v170
    %283 = vmatprep.subr.bf16.mxu0 0
    %284 = vmatpush2.bf16.msra.mxu0 0
    %285 = vmatprep.subr.bf16.mxu0 0
    %286 = vmatpush2.bf16.msra.mxu0 0
    %287 = vmatprep.subr.bf16.mxu0 0
    %288 = vmatpush2.bf16.msra.mxu0 0
    %289 = vmatprep.subr.bf16.mxu0 0
    %290 = vmatpush2.bf16.msra.mxu0 0
    %291 = vmatprep.subr.bf16.mxu0 0
    %292 = vmatpush2.bf16.msra.mxu0 0
    %293 = vmatprep.subr.bf16.mxu0 0
    %294 = vmatpush2.bf16.msra.mxu0 0
    %295 = vmatprep.subr.bf16.mxu0 0
    %296 = vmatpush2.bf16.msra.mxu0 0
    %297 = vmatprep.subr.bf16.mxu0 0
    %298 = vmatpush2.bf16.msra.mxu0 0
    %299 = vmatprep.mubr.bf16.mxu0 0
    %300 = vmatmul.mubr.bf16.gmra.mxu0 %v265
    %v301 = vpop.f32.mrf.mxu0
    %v302 = vadd.f32 %v160, %v301
    %v303 = vpop.f32.mrf.mxu0
    %v304 = vpop.f32.mrf.mxu0
    %v305 = vpop.f32.mrf.mxu0
    %306 = vdwg.mxu0
    %vm307 = vcmask 254976
    %308 = vst.msk [vmem:[#allocation10] sm:$0x3] %vm307, %v212
    %309 = vst.msk [vmem:[#allocation11] sm:$0xff] %vm110, %v302
    %v310 = vpack.c.bf16 %v302, %v302
    %v311 = vpack.c.bf16 %v212, %v212
    %v313 = vsel %vm110, %v310, 0
    %v316 = vsel %vm110, %v311, 0
    %318 = vmatprep.subr.bf16.mxu0 0
    %319 = vmatpush1.bf16.xpose.msra.mxu0 0
    %320 = vmatprep.subr.bf16.mxu0 0
    %321 = vmatpush1.bf16.xpose.msra.mxu0 0
    %322 = vmatprep.subr.bf16.mxu0 0
    %323 = vmatpush1.bf16.xpose.msra.mxu0 0
    %324 = vmatprep.subr.bf16.mxu0 0
    %325 = vmatpush1.bf16.xpose.msra.mxu0 0
    %326 = vmatprep.subr.bf16.mxu0 0
    %327 = vmatpush1.bf16.xpose.msra.mxu0 0
    %328 = vmatprep.subr.bf16.mxu0 0
    %329 = vmatpush1.bf16.xpose.msra.mxu0 0
    %330 = vmatprep.subr.bf16.mxu0 0
    %331 = vmatpush1.bf16.xpose.msra.mxu0 0
    %332 = vmatprep.subr.bf16.mxu0 0
    %333 = vmatpush1.bf16.xpose.msra.mxu0 %v316
    %334 = vmatprep.subr.bf16.mxu0 0
    %335 = vmatpush2.bf16.xpose.msra.mxu0 0
    %336 = vmatprep.subr.bf16.mxu0 0
    %337 = vmatpush2.bf16.xpose.msra.mxu0 0
    %338 = vmatprep.subr.bf16.mxu0 0
    %339 = vmatpush2.bf16.xpose.msra.mxu0 0
    %340 = vmatprep.subr.bf16.mxu0 0
    %341 = vmatpush2.bf16.xpose.msra.mxu0 0
    %342 = vmatprep.subr.bf16.mxu0 0
    %343 = vmatpush2.bf16.xpose.msra.mxu0 0
    %344 = vmatprep.subr.bf16.mxu0 0
    %345 = vmatpush2.bf16.xpose.msra.mxu0 0
    %346 = vmatprep.subr.bf16.mxu0 0
    %347 = vmatpush2.bf16.xpose.msra.mxu0 0
    %348 = vmatprep.subr.bf16.mxu0 0
    %349 = vmatpush2.bf16.xpose.msra.mxu0 0
    %350 = vmatprep.mubr.bf16.mxu0 0
    %351 = vmatmul.mubr.bf16.gmra.mxu0 %v313
    %v352 = vpop.f32.mrf.mxu0
    %v353 = vadd.f32 0.0, %v352
    %v354 = vpop.f32.mrf.mxu0
    %v355 = vpop.f32.mrf.mxu0
    %v356 = vpop.f32.mrf.mxu0
    %357 = vdwg.mxu0
    %v358 = vlaneseq
    %v359 = vshrl.u32 %v358, 7
    %v360 = vlaneseq
    %v361 = vand.u32 %v360, 127
    %v362 = vmul.u32 %v361, 4
    %vm363 = vcmp.ge.s32.totalorder %v359, %v362
    %v364 = vadd.s32 %v361, 1
    %v365 = vmul.u32 %v364, 4
    %vm366 = vcmp.lt.s32.totalorder %v359, %v365
    %vm367 = vmand %vm363, %vm366
    %v368 = vsel %vm367, %v353, 0.0
    %vm369 = vcmask 15360
    %v370 = vsel %vm369, %v368, 0.0
    %371 = vadd.xlane.f32.xlu0 %v370
    %v372 = vpop.xlane.xlu0 %371
    %vm373 = vcmask 7168
    %374 = vst.msk [vmem:[%s8] sm:$0xff] %vm373, %v372
    // Predicated region
    $region42: #{tpu_custom_call.1} parent=1 // pred_check
      _
    $region43: #{tpu_custom_call.1} parent=1 // pred_check_branch
      %376 = sbr.rel (0) target = $region45
    $region44: #{tpu_custom_call.1} parent=1 // pred_region
      %s378 = ssub.s32 32, 32
      %379 = vsyncadd [#allocation4], %s378
      %s381 = sshll.u32 [#allocation10], 4
      %s382 = int_to_ptr.vmem [resolvable:$true] %s381
      %384 = dma.vmem_to_hbm [thread:$0]  %s382, 32, %s6, [#allocation4]
    $region45: #{tpu_custom_call.1} parent=1 // pred_fallthru
      _
    // Predicated region
    $region46: #{tpu_custom_call.1} parent=1 // pred_check
      _
    $region47: #{tpu_custom_call.1} parent=1 // pred_check_branch
      %386 = sbr.rel (0) target = $region49
    $region48: #{tpu_custom_call.1} parent=1 // pred_region
      %s388 = ssub.s32 128, 128
      %389 = vsyncadd [#allocation12], %s388
      %s391 = sshll.u32 [#allocation11], 4
      %s392 = int_to_ptr.vmem [resolvable:$true] %s391
      %394 = dma.vmem_to_hbm [thread:$0]  %s392, 128, %s7, [#allocation12]
    $region49: #{tpu_custom_call.1} parent=1 // pred_fallthru
      _
    // Predicated region
    $region50: #{tpu_custom_call.1} parent=1 // pred_check
      _
    $region51: #{tpu_custom_call.1} parent=1 // pred_check_branch
      %396 = sbr.rel (0) target = $region53
    $region52: #{tpu_custom_call.1} parent=1 // pred_region
      _
    $region53: #{tpu_custom_call.1} parent=1 // pred_fallthru
      _
    // Predicated region
    $region54: #{tpu_custom_call.1} parent=1 // pred_check
      _
    $region55: #{tpu_custom_call.1} parent=1 // pred_check_branch
      %398 = sbr.rel (0) target = $region57
    $region56: #{tpu_custom_call.1} parent=1 // pred_region
      %399 = dma.done [#allocation4], 32
    $region57: #{tpu_custom_call.1} parent=1 // pred_fallthru
      _
    // Predicated region
    $region58: #{tpu_custom_call.1} parent=1 // pred_check
      _
    $region59: #{tpu_custom_call.1} parent=1 // pred_check_branch
      %401 = sbr.rel (0) target = $region61
    $region60: #{tpu_custom_call.1} parent=1 // pred_region
      %402 = dma.done [#allocation12], 128
    $region61: #{tpu_custom_call.1} parent=1 // pred_fallthru
      _
    // Predicated region
    $region62: #{tpu_custom_call.1} parent=1 // pred_check
      _
    $region63: #{tpu_custom_call.1} parent=1 // pred_check_branch
      %404 = sbr.rel (0) target = $region65
    $region64: #{tpu_custom_call.1} parent=1 // pred_region
      _
    $region65: #{tpu_custom_call.1} parent=1 // pred_fallthru
      _
    %405 = vsyncpa [#allocation3], 1
    %406 = vsyncpa [#allocation6], 1
    %407 = vsyncpa [#allocation9], 1
    %408 = vsyncpa [#allocation4], 1
    %409 = vsyncpa [#allocation12], 1

</llo_original>
